<compile_context>
chip_gen: v7x
topology: tpu7x:2x2x1
jax: 0.10.0
libtpu: 0.0.40
codegen_flags: <defaults>
</compile_context>

<pallas_src>
import math
from functools import partial

import numpy as np
import jax
import jax.numpy as jnp
from jax.experimental import pallas as pl
from jax.experimental.pallas import tpu as pltpu


def _mha_kernel(x_ref, qkv_w_ref, qkv_b_ref, o_w_ref, o_b_ref, out_ref,
                *, num_heads, head_dim, embed_dim, seq_len):
    rows, _ = x_ref.shape                 # rows = bb * S  (folded batch*seq)
    H, hd, E, S = num_heads, head_dim, embed_dim, seq_len
    bb = rows // S                        # batch rows handled this grid step
    mm_dtype = qkv_w_ref.dtype            # MXU input dtype (bf16 or f32)
    inv_sqrt_dk = 1.0 / math.sqrt(hd)

    # ---- Fused QKV projection: one (bb*S, D) @ (D, 3E) MXU matmul, f32 acc.
    qkv = jnp.dot(x_ref[...], qkv_w_ref[...],
                  preferred_element_type=jnp.float32) + qkv_b_ref[...]   # (rows, 3E) f32

    # ---- Head split: H lane slices per tensor, then leading-dim-only
    # reshapes (the bb*S -> (bb, S) split lands on an 8-sublane tile boundary
    # in f32, so no extra relayout beyond the hd-wide column extracts).
    # Batch index of the rank-3 tensors is n = h*bb + b.
    def split_heads(col0):
        per_head = [qkv[:, col0 + h * hd: col0 + (h + 1) * hd] for h in range(H)]
        t = jnp.stack(per_head, axis=0)                  # (H, bb*S, hd) f32
        return t.reshape(H * bb, S, hd).astype(mm_dtype)

    q = split_heads(0)          # (H*bb, S, hd)
    k = split_heads(E)
    v = split_heads(2 * E)

    # ---- Attention for all (head, batch) pairs at once: rank-3 einsums with
    # f32 accumulation; softmax math stays f32 on every chip generation.
    logits = jnp.einsum('nqd,nkd->nqk', q, k,
                        preferred_element_type=jnp.float32) * inv_sqrt_dk
    # TODO(synk): optional attention mask (masked_fill) not implemented; the
    # module's default forward uses mask=None.
    logits = logits - jnp.max(logits, axis=-1, keepdims=True)
    p = jnp.exp(logits)
    attn = p * pl.reciprocal(jnp.sum(p, axis=-1, keepdims=True), approx=True)

    vals = jnp.einsum('nqk,nkd->nqd', attn.astype(mm_dtype), v,
                      preferred_element_type=jnp.float32)                # (H*bb, S, hd) f32

    # ---- Merge heads back onto the lane axis once, then a single output
    # projection matmul with contraction K = E.
    vals = vals.reshape(H, bb * S, hd)                                   # tile-aligned merge
    merged = jnp.concatenate([vals[h] for h in range(H)], axis=-1)       # (rows, E) f32
    out = jnp.dot(merged.astype(mm_dtype), o_w_ref[...],
                  preferred_element_type=jnp.float32) + o_b_ref[...]     # (rows, E) f32

    out_ref[...] = out.astype(out_ref.dtype)

    # TODO(synk): production-scale S/E: add a KV-tile grid axis ("arbitrary")
    # with online-softmax accumulators instead of materializing (N,S,S)
    # logits, budget VMEM against v7x's 64 MiB via vmem_limit_bytes, and make
    # the output block 128-lane dense (pad E to 128 or emit (B, S*E)) so the
    # store is an unmasked vst instead of masked partial stores.


def multihead_attention(x, qkv_w, qkv_b, o_w, o_b, *, num_heads,
                        matmul_dtype=jnp.bfloat16, num_blocks=1):
    """Forward pass of the SensorFormer_Lite MultiheadAttention module.

    x:      (B, S, D)
    qkv_w:  (D, 3E)  = qkv_proj.weight.T  (y = x @ W + b orientation), columns
                       in the module's per-head interleaved [q_h|k_h|v_h] order.
    qkv_b:  (3E,)
    o_w:    (E, E)   = o_proj.weight.T
    o_b:    (E,)

    matmul_dtype: MXU input dtype.  bf16 default on ALL generations (f32
                  accumulation; softmax stays f32).  Pass jnp.float32 for a
                  full-precision path.
    num_blocks:   grid steps over the batch axis.  1 (default) is right for
                  single-TensorCore chips (v5e/v6e) and for small workloads;
                  set 2 on v7x only when per-TC work is well above ~1 us.
    """
    B, S, D = x.shape
    threeE = qkv_w.shape[1]
    E = threeE // 3
    assert E % num_heads == 0
    hd = E // num_heads
    assert B % num_blocks == 0

    # Repack interleaved per-head [q_h|k_h|v_h] columns into contiguous
    # [Q | K | V] slabs (heads contiguous inside each slab).
    perm = np.asarray([h * 3 * hd + s * hd + d
                       for s in range(3)
                       for h in range(num_heads)
                       for d in range(hd)], dtype=np.int32)
    qkv_w_in = jnp.asarray(qkv_w)[:, perm].astype(matmul_dtype)          # (D, 3E)
    qkv_b_in = jnp.asarray(qkv_b)[perm].reshape(1, threeE).astype(jnp.float32)
    o_w_in = jnp.asarray(o_w).astype(matmul_dtype)                       # (E, E)
    o_b_in = jnp.asarray(o_b).reshape(1, E).astype(jnp.float32)

    # Fold B and S; cast x to the matmul dtype here (fuses upstream, halves
    # the x HBM->VMEM DMA on the bf16 path).
    x2 = x.reshape(B * S, D).astype(matmul_dtype)                        # (B*S, D)

    bb = B // num_blocks            # batch rows per grid step
    rows = bb * S
    grid = (num_blocks,)

    kernel = partial(_mha_kernel, num_heads=num_heads, head_dim=hd,
                     embed_dim=E, seq_len=S)

    out = pl.pallas_call(
        kernel,
        out_shape=jax.ShapeDtypeStruct((B * S, E), x.dtype),
        grid_spec=pltpu.PrefetchScalarGridSpec(
            num_scalar_prefetch=0,
            grid=grid,
            in_specs=[
                pl.BlockSpec((rows, D), lambda i: (i, 0)),
                pl.BlockSpec((D, threeE), lambda i: (0, 0)),
                pl.BlockSpec((1, threeE), lambda i: (0, 0)),
                pl.BlockSpec((E, E), lambda i: (0, 0)),
                pl.BlockSpec((1, E), lambda i: (0, 0)),
            ],
            out_specs=pl.BlockSpec((rows, E), lambda i: (i, 0)),
        ),
        compiler_params=pltpu.CompilerParams(
            dimension_semantics=("parallel",)),
    )(x2, qkv_w_in, qkv_b_in, o_w_in, o_b_in)

    return out.reshape(B, S, E)


def _xavier_uniform(key, shape):
    # shape = (out_features, in_features), matching nn.Linear.weight.
    fan_out, fan_in = shape
    limit = math.sqrt(6.0 / (fan_in + fan_out))
    return jax.random.uniform(key, shape, jnp.float32, -limit, limit)


def _reference_mha(x, qkv_w, qkv_b, o_w, o_b, num_heads):
    # Pure-JAX reference mirroring the PyTorch forward (interleaved layout).
    B, S, D = x.shape
    E = o_w.shape[1]
    hd = E // num_heads
    qkv = x @ qkv_w + qkv_b                                   # (B,S,3E)
    qkv = qkv.reshape(B, S, num_heads, 3 * hd).transpose(0, 2, 1, 3)
    q, k, v = qkv[..., :hd], qkv[..., hd:2 * hd], qkv[..., 2 * hd:]
    logits = jnp.einsum("bhqd,bhkd->bhqk", q, k) / math.sqrt(hd)
    attn = jax.nn.softmax(logits, axis=-1)
    vals = jnp.einsum("bhqk,bhkd->bhqd", attn, v)
    vals = vals.transpose(0, 2, 1, 3).reshape(B, S, E)
    return vals @ o_w + o_b


if __name__ == "__main__":
    # Small shapes consistent with the module's forward.
    B, S = 2, 8
    input_dim = 32
    embed_dim = 32
    num_heads = 4

    root = jax.random.PRNGKey(0)
    kx, kqkv, ko = jax.random.split(root, 3)

    x = jax.random.normal(kx, (B, S, input_dim), dtype=jnp.float32)

    # nn.Linear weights: (out, in), xavier-uniform; biases zero (as in module).
    qkv_weight = _xavier_uniform(kqkv, (3 * embed_dim, input_dim))
    qkv_bias = jnp.zeros((3 * embed_dim,), jnp.float32)
    o_weight = _xavier_uniform(ko, (embed_dim, embed_dim))
    o_bias = jnp.zeros((embed_dim,), jnp.float32)

    ref = _reference_mha(x, qkv_weight.T, qkv_bias, o_weight.T, o_bias, num_heads)

    # Default path: bf16 MXU inputs, f32 accumulation / softmax.
    out_bf16 = jax.block_until_ready(multihead_attention(
        x, qkv_weight.T, qkv_bias, o_weight.T, o_bias, num_heads=num_heads))
    assert out_bf16.shape == (B, S, embed_dim)
    assert jnp.allclose(out_bf16, ref, atol=5e-2, rtol=5e-2), "bf16 kernel mismatch vs reference"

    # Full-precision path (f32 MXU inputs).
    out_f32 = jax.block_until_ready(multihead_attention(
        x, qkv_weight.T, qkv_bias, o_weight.T, o_bias, num_heads=num_heads,
        matmul_dtype=jnp.float32))
    assert jnp.allclose(out_f32, ref, atol=2e-2, rtol=2e-2), "f32 kernel mismatch vs reference"

    print("KERNEL_OK")
</pallas_src>

<mosaic_0001>
module attributes {stable_mosaic.version = 11 : i64} {
  func.func @_mha_kernel(%arg0: i32, %arg1: memref<16x32xbf16, #tpu.memory_space<vmem>>, %arg2: memref<32x96xbf16, #tpu.memory_space<vmem>>, %arg3: memref<1x96xf32, #tpu.memory_space<vmem>>, %arg4: memref<32x32xbf16, #tpu.memory_space<vmem>>, %arg5: memref<1x32xf32, #tpu.memory_space<vmem>>, %arg6: memref<16x32xf32, #tpu.memory_space<vmem>>) attributes {dimension_semantics = [#tpu.dimension_semantics<parallel>], iteration_bounds = array<i64: 1>, scalar_prefetch = 0 : i64, scratch_operands = 0 : i64, tpu.core_type = #tpu.core_type<tc>, window_params = [{transform_indices = @transform_0, window_bounds = array<i64: 16, 32>}, {pipeline_mode = #tpu.pipeline_mode<synchronous>, transform_indices = @transform_1, window_bounds = array<i64: 32, 96>}, {pipeline_mode = #tpu.pipeline_mode<synchronous>, transform_indices = @transform_2, window_bounds = array<i64: 1, 96>}, {pipeline_mode = #tpu.pipeline_mode<synchronous>, transform_indices = @transform_3, window_bounds = array<i64: 32, 32>}, {pipeline_mode = #tpu.pipeline_mode<synchronous>, transform_indices = @transform_4, window_bounds = array<i64: 1, 32>}, {transform_indices = @transform_5, window_bounds = array<i64: 16, 32>}]} {
    %c0 = arith.constant 0 : index
    %c0_0 = arith.constant 0 : index
    %0 = vector.load %arg1[%c0, %c0_0] : memref<16x32xbf16, #tpu.memory_space<vmem>>, vector<16x32xbf16>
    %c0_1 = arith.constant 0 : index
    %c0_2 = arith.constant 0 : index
    %1 = vector.load %arg2[%c0_1, %c0_2] : memref<32x96xbf16, #tpu.memory_space<vmem>>, vector<32x96xbf16>
    %cst = arith.constant dense<0.000000e+00> : vector<16x96xf32>
    %2 = tpu.matmul %0, %1, %cst {dimension_numbers = #tpu.dot_dimension_numbers<[1], [0], [0], [1], [0, 0, 1, 1], [], []>} : vector<16x32xbf16>, vector<32x96xbf16>, vector<16x96xf32> -> vector<16x96xf32>
    %c0_3 = arith.constant 0 : index
    %c0_4 = arith.constant 0 : index
    %3 = vector.load %arg3[%c0_3, %c0_4] : memref<1x96xf32, #tpu.memory_space<vmem>>, vector<1x96xf32>
    %4 = vector.broadcast %3 : vector<1x96xf32> to vector<16x96xf32>
    %5 = arith.addf %2, %4 : vector<16x96xf32>
    %6 = vector.extract_strided_slice %5 {offsets = [0, 0], sizes = [16, 8], strides = [1, 1]} : vector<16x96xf32> to vector<16x8xf32>
    %7 = vector.extract_strided_slice %5 {offsets = [0, 8], sizes = [16, 8], strides = [1, 1]} : vector<16x96xf32> to vector<16x8xf32>
    %8 = vector.extract_strided_slice %5 {offsets = [0, 16], sizes = [16, 8], strides = [1, 1]} : vector<16x96xf32> to vector<16x8xf32>
    %9 = vector.extract_strided_slice %5 {offsets = [0, 24], sizes = [16, 8], strides = [1, 1]} : vector<16x96xf32> to vector<16x8xf32>
    %10 = vector.shape_cast %6 : vector<16x8xf32> to vector<1x16x8xf32>
    %11 = vector.shape_cast %7 : vector<16x8xf32> to vector<1x16x8xf32>
    %12 = vector.shape_cast %8 : vector<16x8xf32> to vector<1x16x8xf32>
    %13 = vector.shape_cast %9 : vector<16x8xf32> to vector<1x16x8xf32>
    %14 = tpu.concatenate %10, %11, %12, %13 in 0 : vector<1x16x8xf32>, vector<1x16x8xf32>, vector<1x16x8xf32>, vector<1x16x8xf32> -> vector<4x16x8xf32>
    %15 = vector.shape_cast %14 : vector<4x16x8xf32> to vector<8x8x8xf32>
    %16 = arith.truncf %15 : vector<8x8x8xf32> to vector<8x8x8xbf16>
    %17 = vector.extract_strided_slice %5 {offsets = [0, 32], sizes = [16, 8], strides = [1, 1]} : vector<16x96xf32> to vector<16x8xf32>
    %18 = vector.extract_strided_slice %5 {offsets = [0, 40], sizes = [16, 8], strides = [1, 1]} : vector<16x96xf32> to vector<16x8xf32>
    %19 = vector.extract_strided_slice %5 {offsets = [0, 48], sizes = [16, 8], strides = [1, 1]} : vector<16x96xf32> to vector<16x8xf32>
    %20 = vector.extract_strided_slice %5 {offsets = [0, 56], sizes = [16, 8], strides = [1, 1]} : vector<16x96xf32> to vector<16x8xf32>
    %21 = vector.shape_cast %17 : vector<16x8xf32> to vector<1x16x8xf32>
    %22 = vector.shape_cast %18 : vector<16x8xf32> to vector<1x16x8xf32>
    %23 = vector.shape_cast %19 : vector<16x8xf32> to vector<1x16x8xf32>
    %24 = vector.shape_cast %20 : vector<16x8xf32> to vector<1x16x8xf32>
    %25 = tpu.concatenate %21, %22, %23, %24 in 0 : vector<1x16x8xf32>, vector<1x16x8xf32>, vector<1x16x8xf32>, vector<1x16x8xf32> -> vector<4x16x8xf32>
    %26 = vector.shape_cast %25 : vector<4x16x8xf32> to vector<8x8x8xf32>
    %27 = arith.truncf %26 : vector<8x8x8xf32> to vector<8x8x8xbf16>
    %28 = vector.extract_strided_slice %5 {offsets = [0, 64], sizes = [16, 8], strides = [1, 1]} : vector<16x96xf32> to vector<16x8xf32>
    %29 = vector.extract_strided_slice %5 {offsets = [0, 72], sizes = [16, 8], strides = [1, 1]} : vector<16x96xf32> to vector<16x8xf32>
    %30 = vector.extract_strided_slice %5 {offsets = [0, 80], sizes = [16, 8], strides = [1, 1]} : vector<16x96xf32> to vector<16x8xf32>
    %31 = vector.extract_strided_slice %5 {offsets = [0, 88], sizes = [16, 8], strides = [1, 1]} : vector<16x96xf32> to vector<16x8xf32>
    %32 = vector.shape_cast %28 : vector<16x8xf32> to vector<1x16x8xf32>
    %33 = vector.shape_cast %29 : vector<16x8xf32> to vector<1x16x8xf32>
    %34 = vector.shape_cast %30 : vector<16x8xf32> to vector<1x16x8xf32>
    %35 = vector.shape_cast %31 : vector<16x8xf32> to vector<1x16x8xf32>
    %36 = tpu.concatenate %32, %33, %34, %35 in 0 : vector<1x16x8xf32>, vector<1x16x8xf32>, vector<1x16x8xf32>, vector<1x16x8xf32> -> vector<4x16x8xf32>
    %37 = vector.shape_cast %36 : vector<4x16x8xf32> to vector<8x8x8xf32>
    %38 = arith.truncf %37 : vector<8x8x8xf32> to vector<8x8x8xbf16>
    "tpu.trace_start"() <{level = 10 : i32, message = "nqd,nkd->nqk"}> : () -> ()
    %cst_5 = arith.constant dense<0.000000e+00> : vector<8x8x8xf32>
    %39 = tpu.matmul %16, %27, %cst_5 {dimension_numbers = #tpu.dot_dimension_numbers<[2], [2], [1], [1], [0, 0, 0, 1, 1, 1], [0], [0]>} : vector<8x8x8xbf16>, vector<8x8x8xbf16>, vector<8x8x8xf32> -> vector<8x8x8xf32>
    "tpu.trace_stop"() : () -> ()
    %cst_6 = arith.constant 0.353553385 : f32
    %40 = vector.broadcast %cst_6 : f32 to vector<8x8x8xf32>
    %41 = arith.mulf %39, %40 : vector<8x8x8xf32>
    %cst_7 = arith.constant dense<0xFF800000> : vector<8x8xf32>
    %42 = vector.multi_reduction <maximumf>, %41, %cst_7 [2] : vector<8x8x8xf32> to vector<8x8xf32>
    %43 = vector.shape_cast %42 : vector<8x8xf32> to vector<8x8x1xf32>
    %44 = vector.broadcast %43 : vector<8x8x1xf32> to vector<8x8x8xf32>
    %45 = arith.subf %41, %44 : vector<8x8x8xf32>
    %46 = math.exp %45 : vector<8x8x8xf32>
    %cst_8 = arith.constant dense<0.000000e+00> : vector<8x8xf32>
    %47 = vector.multi_reduction <add>, %46, %cst_8 [2] : vector<8x8x8xf32> to vector<8x8xf32>
    %48 = vector.shape_cast %47 : vector<8x8xf32> to vector<8x8x1xf32>
    %49 = tpu.reciprocal %48 {approx = true} : vector<8x8x1xf32> -> vector<8x8x1xf32>
    %50 = vector.broadcast %49 : vector<8x8x1xf32> to vector<8x8x8xf32>
    %51 = arith.mulf %46, %50 : vector<8x8x8xf32>
    %52 = arith.truncf %51 : vector<8x8x8xf32> to vector<8x8x8xbf16>
    "tpu.trace_start"() <{level = 10 : i32, message = "nqk,nkd->nqd"}> : () -> ()
    %cst_9 = arith.constant dense<0.000000e+00> : vector<8x8x8xf32>
    %53 = tpu.matmul %52, %38, %cst_9 {dimension_numbers = #tpu.dot_dimension_numbers<[2], [1], [1], [2], [0, 0, 0, 1, 1, 2], [0], [0]>} : vector<8x8x8xbf16>, vector<8x8x8xbf16>, vector<8x8x8xf32> -> vector<8x8x8xf32>
    "tpu.trace_stop"() : () -> ()
    %54 = vector.shape_cast %53 : vector<8x8x8xf32> to vector<4x16x8xf32>
    %55 = vector.extract_strided_slice %54 {offsets = [0, 0, 0], sizes = [1, 16, 8], strides = [1, 1, 1]} : vector<4x16x8xf32> to vector<1x16x8xf32>
    %56 = vector.shape_cast %55 : vector<1x16x8xf32> to vector<16x8xf32>
    %57 = vector.extract_strided_slice %54 {offsets = [1, 0, 0], sizes = [1, 16, 8], strides = [1, 1, 1]} : vector<4x16x8xf32> to vector<1x16x8xf32>
    %58 = vector.shape_cast %57 : vector<1x16x8xf32> to vector<16x8xf32>
    %59 = vector.extract_strided_slice %54 {offsets = [2, 0, 0], sizes = [1, 16, 8], strides = [1, 1, 1]} : vector<4x16x8xf32> to vector<1x16x8xf32>
    %60 = vector.shape_cast %59 : vector<1x16x8xf32> to vector<16x8xf32>
    %61 = vector.extract_strided_slice %54 {offsets = [3, 0, 0], sizes = [1, 16, 8], strides = [1, 1, 1]} : vector<4x16x8xf32> to vector<1x16x8xf32>
    %62 = vector.shape_cast %61 : vector<1x16x8xf32> to vector<16x8xf32>
    %63 = tpu.concatenate %56, %58, %60, %62 in 1 : vector<16x8xf32>, vector<16x8xf32>, vector<16x8xf32>, vector<16x8xf32> -> vector<16x32xf32>
    %64 = arith.truncf %63 : vector<16x32xf32> to vector<16x32xbf16>
    %c0_10 = arith.constant 0 : index
    %c0_11 = arith.constant 0 : index
    %65 = vector.load %arg4[%c0_10, %c0_11] : memref<32x32xbf16, #tpu.memory_space<vmem>>, vector<32x32xbf16>
    %cst_12 = arith.constant dense<0.000000e+00> : vector<16x32xf32>
    %66 = tpu.matmul %64, %65, %cst_12 {dimension_numbers = #tpu.dot_dimension_numbers<[1], [0], [0], [1], [0, 0, 1, 1], [], []>} : vector<16x32xbf16>, vector<32x32xbf16>, vector<16x32xf32> -> vector<16x32xf32>
    %c0_13 = arith.constant 0 : index
    %c0_14 = arith.constant 0 : index
    %67 = vector.load %arg5[%c0_13, %c0_14] : memref<1x32xf32, #tpu.memory_space<vmem>>, vector<1x32xf32>
    %68 = vector.broadcast %67 : vector<1x32xf32> to vector<16x32xf32>
    %69 = arith.addf %66, %68 : vector<16x32xf32>
    %c0_15 = arith.constant 0 : index
    %c0_16 = arith.constant 0 : index
    %70 = vector.load %arg6[%c0_15, %c0_16] : memref<16x32xf32, #tpu.memory_space<vmem>>, vector<16x32xf32>
    tpu.vector_store %arg6[%c0_15, %c0_16], %69 {strides = array<i32>} : memref<16x32xf32, #tpu.memory_space<vmem>>, vector<16x32xf32>,
    return
  }
  func.func @transform_0(%arg0: i32) -> (i32, i32) {
    %c0_i32 = arith.constant 0 : i32
    %c0_i32_0 = arith.constant 0 : i32
    return %arg0, %c0_i32 : i32, i32
  }
  func.func @transform_1(%arg0: i32) -> (i32, i32) {
    %c0_i32 = arith.constant 0 : i32
    %c0_i32_0 = arith.constant 0 : i32
    %c0_i32_1 = arith.constant 0 : i32
    return %c0_i32, %c0_i32_0 : i32, i32
  }
  func.func @transform_2(%arg0: i32) -> (i32, i32) {
    %c0_i32 = arith.constant 0 : i32
    %c0_i32_0 = arith.constant 0 : i32
    %c0_i32_1 = arith.constant 0 : i32
    return %c0_i32, %c0_i32_0 : i32, i32
  }
  func.func @transform_3(%arg0: i32) -> (i32, i32) {
    %c0_i32 = arith.constant 0 : i32
    %c0_i32_0 = arith.constant 0 : i32
    %c0_i32_1 = arith.constant 0 : i32
    return %c0_i32, %c0_i32_0 : i32, i32
  }
  func.func @transform_4(%arg0: i32) -> (i32, i32) {
    %c0_i32 = arith.constant 0 : i32
    %c0_i32_0 = arith.constant 0 : i32
    %c0_i32_1 = arith.constant 0 : i32
    return %c0_i32, %c0_i32_0 : i32, i32
  }
  func.func @transform_5(%arg0: i32) -> (i32, i32) {
    %c0_i32 = arith.constant 0 : i32
    %c0_i32_0 = arith.constant 0 : i32
    return %arg0, %c0_i32 : i32, i32
  }
}

</mosaic_0001>

<llo_original>
// kernel: tpu_custom_call.1
$region0: #{tpu_custom_call.1}
  #allocation0 [shape = 'u32[]', space=smem, size = 0x4, offset = 0x4, fixed_abs, tag = 'smem constant byte address 0x4 - core index']
  #allocation1 [shape = 'u32[144,128]{1,0:T(1,128)}', space=vmem, size = 0x12000, scoped, tag = 'internal scratch']
  %s0 = inlined_call_operand.hbm [shape: bf16[16,32], index: 0, kind: input, shape index: {}]
  %s1 = inlined_call_operand.hbm [shape: bf16[32,96], index: 1, kind: input, shape index: {}]
  %s2 = inlined_call_operand.vmem [shape: f32[1,96], index: 2, kind: input, shape index: {}]
  %s3 = inlined_call_operand.hbm [shape: bf16[32,32], index: 3, kind: input, shape index: {}]
  %s4 = inlined_call_operand.vmem [shape: f32[1,32], index: 4, kind: input, shape index: {}]
  %s5 = inlined_call_operand.hbm [shape: f32[16,32], index: 5, kind: output, shape index: {}]
  %s6 = sld [smem:[#allocation0]]
  $region42: #{tpu_custom_call.1} parent=0
    _
  %s8 = ssub.s32 1, %s6
  %s9 = scalar_select 0, %s8, %s6
  $region1: #{tpu_custom_call.1} parent=0
    #allocation2 [shape = 'u8[4096]{0}', space=vmem, size = 0x1000, scoped, tag = 'input window, operand 0, single buffered']
    #allocation3 [shape = 's32[1]{0}', space=sflag, size = 0x4, scoped, tag = 'scoped memory for tpu_custom_call.1']
    #allocation4 [shape = 's32[1]{0}', space=sflag, size = 0x4, scoped, tag = 'scoped memory for tpu_custom_call.1']
    #allocation5 [shape = 'u8[8192]{0}', space=vmem, size = 0x2000, scoped, tag = 'input window, operand 1, single buffered']
    #allocation6 [shape = 's32[1]{0}', space=sflag, size = 0x4, scoped, tag = 'scoped memory for tpu_custom_call.1']
    #allocation7 [shape = 'u8[8192]{0}', space=vmem, size = 0x2000, scoped, tag = 'input window, operand 3, single buffered']
    #allocation8 [shape = 'u8[8192]{0}', space=vmem, size = 0x2000, scoped, tag = 'output window, operand 0, single buffered']
    %10 = vsyncpa [#allocation3], 0
    %11 = vsyncpa [#allocation6], 0
    %12 = vsyncpa [#allocation4], 0
    // Predicated region
    $region2: #{tpu_custom_call.1} parent=1 // pred_check
      _
    $region3: #{tpu_custom_call.1} parent=1 // pred_check_branch
      %14 = sbr.rel (0) target = $region5
    $region4: #{tpu_custom_call.1} parent=1 // pred_region
      %s16 = ssub.s32 128, 128
      %17 = vsyncadd [#allocation3], %s16
      %s18 = sshll.u32 [#allocation2], 4
      %s19 = int_to_ptr.vmem [resolvable:$true] %s18
      %24 = dma.hbm_to_vmem [thread:$0]  %s0, 128, %s19, [#allocation3], 64, 64, 4
    $region5: #{tpu_custom_call.1} parent=1 // pred_fallthru
      _
    // Predicated region
    $region6: #{tpu_custom_call.1} parent=1 // pred_check
      _
    $region7: #{tpu_custom_call.1} parent=1 // pred_check_branch
      %26 = sbr.rel (0) target = $region9
    $region8: #{tpu_custom_call.1} parent=1 // pred_region
      %s28 = ssub.s32 256, 256
      %29 = vsyncadd [#allocation6], %s28
      %s30 = sshll.u32 [#allocation5], 4
      %s31 = int_to_ptr.vmem [resolvable:$true] %s30
      %36 = dma.hbm_to_vmem [thread:$0]  %s1, 256, %s31, [#allocation6], 64, 64, 4
    $region9: #{tpu_custom_call.1} parent=1 // pred_fallthru
      _
    // Predicated region
    $region10: #{tpu_custom_call.1} parent=1 // pred_check
      _
    $region11: #{tpu_custom_call.1} parent=1 // pred_check_branch
      %38 = sbr.rel (0) target = $region13
    $region12: #{tpu_custom_call.1} parent=1 // pred_region
      _
    $region13: #{tpu_custom_call.1} parent=1 // pred_fallthru
      _
    // Predicated region
    $region14: #{tpu_custom_call.1} parent=1 // pred_check
      _
    $region15: #{tpu_custom_call.1} parent=1 // pred_check_branch
      %40 = sbr.rel (0) target = $region17
    $region16: #{tpu_custom_call.1} parent=1 // pred_region
      %s42 = ssub.s32 256, 256
      %43 = vsyncadd [#allocation6], %s42
      %s44 = sshll.u32 [#allocation7], 4
      %s45 = int_to_ptr.vmem [resolvable:$true] %s44
      %50 = dma.hbm_to_vmem [thread:$0]  %s3, 256, %s45, [#allocation6], 64, 64, 4
    $region17: #{tpu_custom_call.1} parent=1 // pred_fallthru
      _
    // Predicated region
    $region18: #{tpu_custom_call.1} parent=1 // pred_check
      _
    $region19: #{tpu_custom_call.1} parent=1 // pred_check_branch
      %52 = sbr.rel (0) target = $region21
    $region20: #{tpu_custom_call.1} parent=1 // pred_region
      _
    $region21: #{tpu_custom_call.1} parent=1 // pred_fallthru
      _
    // Predicated region
    $region22: #{tpu_custom_call.1} parent=1 // pred_check
      _
    $region23: #{tpu_custom_call.1} parent=1 // pred_check_branch
      %54 = sbr.rel (0) target = $region25
    $region24: #{tpu_custom_call.1} parent=1 // pred_region
      %55 = dma.done [#allocation3], 128
    $region25: #{tpu_custom_call.1} parent=1 // pred_fallthru
      _
    // Predicated region
    $region26: #{tpu_custom_call.1} parent=1 // pred_check
      _
    $region27: #{tpu_custom_call.1} parent=1 // pred_check_branch
      %57 = sbr.rel (0) target = $region29
    $region28: #{tpu_custom_call.1} parent=1 // pred_region
      %58 = dma.done [#allocation6], 256
    $region29: #{tpu_custom_call.1} parent=1 // pred_fallthru
      _
    // Predicated region
    $region30: #{tpu_custom_call.1} parent=1 // pred_check
      _
    $region31: #{tpu_custom_call.1} parent=1 // pred_check_branch
      %60 = sbr.rel (0) target = $region33
    $region32: #{tpu_custom_call.1} parent=1 // pred_region
      %61 = dma.done [#allocation6], 256
    $region33: #{tpu_custom_call.1} parent=1 // pred_fallthru
      _
    %v63 = vld [vmem:[#allocation2] sm:$0xf]
    %v64 = vld [vmem:[#allocation2 + $0x4] sm:$0xf]
    %v65 = vld [vmem:[#allocation5] sm:$0xf]
    %v66 = vld [vmem:[#allocation5 + $0x4] sm:$0xf]
    %v67 = vld [vmem:[#allocation5 + $0x8] sm:$0xf]
    %v68 = vld [vmem:[#allocation5 + $0xc] sm:$0xf]
    %v69 = vld [vmem:[%s2] sm:$0x1]
    %v71 = vlaneseq
    %v72 = vshrl.u32 %v71, 7
    %v73 = vsub.s32 0, %v72
    %v74 = vrot.slane %v69, %v73
    %v78 = vunpack.c.l.b16 %v63
    %v79 = vunpack.c.l.b16 %v64
    %v80 = vpack.c.b16 %v79, %v78
    %v85 = vunpack.c.l.b16 %v65
    %v86 = vunpack.c.l.b16 %v66
    %v87 = vunpack.c.l.b16 %v67
    %v88 = vunpack.c.l.b16 %v68
    %v89 = vpack.c.b16 %v86, %v85
    %v90 = vpack.c.b16 %v88, %v87
    %vm93 = vcmask 261120
    %v95 = vsel %vm93, %v80, 0
    %97 = vmatprep.subr.bf16.mxu0 0
    %98 = vmatpush1.bf16.msra.mxu0 %v89
    %99 = vmatprep.subr.bf16.mxu0 0
    %100 = vmatpush1.bf16.msra.mxu0 %v90
    %101 = vmatprep.subr.bf16.mxu0 0
    %102 = vmatpush1.bf16.msra.mxu0 0
    %103 = vmatprep.subr.bf16.mxu0 0
    %104 = vmatpush1.bf16.msra.mxu0 0
    %105 = vmatprep.subr.bf16.mxu0 0
    %106 = vmatpush1.bf16.msra.mxu0 0
    %107 = vmatprep.subr.bf16.mxu0 0
    %108 = vmatpush1.bf16.msra.mxu0 0
    %109 = vmatprep.subr.bf16.mxu0 0
    %110 = vmatpush1.bf16.msra.mxu0 0
    %111 = vmatprep.subr.bf16.mxu0 0
    %112 = vmatpush1.bf16.msra.mxu0 0
    %113 = vmatprep.subr.bf16.mxu0 0
    %114 = vmatpush1.bf16.msra.mxu0 0
    %115 = vmatprep.subr.bf16.mxu0 0
    %116 = vmatpush1.bf16.msra.mxu0 0
    %117 = vmatprep.subr.bf16.mxu0 0
    %118 = vmatpush1.bf16.msra.mxu0 0
    %119 = vmatprep.subr.bf16.mxu0 0
    %120 = vmatpush1.bf16.msra.mxu0 0
    %121 = vmatprep.subr.bf16.mxu0 0
    %122 = vmatpush1.bf16.msra.mxu0 0
    %123 = vmatprep.subr.bf16.mxu0 0
    %124 = vmatpush1.bf16.msra.mxu0 0
    %125 = vmatprep.subr.bf16.mxu0 0
    %126 = vmatpush1.bf16.msra.mxu0 0
    %127 = vmatprep.subr.bf16.mxu0 0
    %128 = vmatpush1.bf16.msra.mxu0 0
    %129 = vmatprep.mubr.bf16.mxu0 0
    %130 = vmatmul.mubr.bf16.gmra.mrb[0].mxu0 %v95
    %v131 = vpop.f32.mrb[0].mxu0
    %v132 = vadd.f32 %v74, %v131
    %v133 = vpop.f32.mrb[0].mxu0
    %v134 = vpop.f32.mrb[0].mxu0
    %v135 = vadd.f32 %v74, %v134
    %v136 = vpop.f32.mrb[0].mxu0
    %137 = vdwg.mxu0
    %140 = vrot.lane.b32.xlu0 %v132, 120
    %v141 = vpop.permute.xlu0 %140
    %142 = vrot.lane.b32.xlu0 %v135, 120
    %v143 = vpop.permute.xlu0 %142
    %146 = vrot.lane.b32.xlu0 %v132, 112
    %v147 = vpop.permute.xlu0 %146
    %148 = vrot.lane.b32.xlu0 %v135, 112
    %v149 = vpop.permute.xlu0 %148
    %152 = vrot.lane.b32.xlu0 %v132, 104
    %v153 = vpop.permute.xlu0 %152
    %154 = vrot.lane.b32.xlu0 %v135, 104
    %v155 = vpop.permute.xlu0 %154
    %v158 = vpack.c.bf16 %v132, %v132
    %v159 = vpack.c.bf16 %v135, %v135
    %v160 = vpack.c.bf16 %v141, %v141
    %v161 = vpack.c.bf16 %v143, %v143
    %v162 = vpack.c.bf16 %v147, %v147
    %v163 = vpack.c.bf16 %v149, %v149
    %v164 = vpack.c.bf16 %v153, %v153
    %v165 = vpack.c.bf16 %v155, %v155
    %167 = vrot.lane.b32.xlu0 %v158, 96
    %v168 = vpop.permute.xlu0 %167
    %vm169 = vcmask 64512
    %v171 = vsel %vm169, %v158, 0
    %v174 = vsel %vm169, %v168, 0
    %176 = vmatprep.subr.bf16.mxu0 0
    %177 = vmatpush1.bf16.xpose.msra.mxu0 %v174
    %178 = vmatprep.subr.bf16.mxu0 0
    %179 = vmatpush1.bf16.xpose.msra.mxu0 0
    %180 = vmatprep.subr.bf16.mxu0 0
    %181 = vmatpush1.bf16.xpose.msra.mxu0 0
    %182 = vmatprep.subr.bf16.mxu0 0
    %183 = vmatpush1.bf16.xpose.msra.mxu0 0
    %184 = vmatprep.subr.bf16.mxu0 0
    %185 = vmatpush1.bf16.xpose.msra.mxu0 0
    %186 = vmatprep.subr.bf16.mxu0 0
    %187 = vmatpush1.bf16.xpose.msra.mxu0 0
    %188 = vmatprep.subr.bf16.mxu0 0
    %189 = vmatpush1.bf16.xpose.msra.mxu0 0
    %190 = vmatprep.subr.bf16.mxu0 0
    %191 = vmatpush1.bf16.xpose.msra.mxu0 0
    %192 = vmatprep.subr.bf16.mxu0 0
    %193 = vmatpush1.bf16.xpose.msra.mxu0 0
    %194 = vmatprep.subr.bf16.mxu0 0
    %195 = vmatpush1.bf16.xpose.msra.mxu0 0
    %196 = vmatprep.subr.bf16.mxu0 0
    %197 = vmatpush1.bf16.xpose.msra.mxu0 0
    %198 = vmatprep.subr.bf16.mxu0 0
    %199 = vmatpush1.bf16.xpose.msra.mxu0 0
    %200 = vmatprep.subr.bf16.mxu0 0
    %201 = vmatpush1.bf16.xpose.msra.mxu0 0
    %202 = vmatprep.subr.bf16.mxu0 0
    %203 = vmatpush1.bf16.xpose.msra.mxu0 0
    %204 = vmatprep.subr.bf16.mxu0 0
    %205 = vmatpush1.bf16.xpose.msra.mxu0 0
    %206 = vmatprep.subr.bf16.mxu0 0
    %207 = vmatpush1.bf16.xpose.msra.mxu0 0
    %208 = vmatprep.mubr.bf16.mxu0 0
    %209 = vmatmul.mubr.bf16.gmra.mrb[0].mxu0 %v171
    %v210 = vpop.f32.mrb[0].mxu0
    %v211 = vadd.f32 0.0, %v210
    %v212 = vpop.f32.mrb[0].mxu0
    %v213 = vpop.f32.mrb[0].mxu0
    %v214 = vpop.f32.mrb[0].mxu0
    %215 = vdwg.mxu0
    %217 = vrot.lane.b32.xlu0 %v159, 96
    %v218 = vpop.permute.xlu0 %217
    %v220 = vsel %vm169, %v159, 0
    %v223 = vsel %vm169, %v218, 0
    %225 = vmatprep.subr.bf16.mxu0 0
    %226 = vmatpush1.bf16.xpose.msra.mxu0 %v223
    %227 = vmatprep.subr.bf16.mxu0 0
    %228 = vmatpush1.bf16.xpose.msra.mxu0 0
    %229 = vmatprep.subr.bf16.mxu0 0
    %230 = vmatpush1.bf16.xpose.msra.mxu0 0
    %231 = vmatprep.subr.bf16.mxu0 0
    %232 = vmatpush1.bf16.xpose.msra.mxu0 0
    %233 = vmatprep.subr.bf16.mxu0 0
    %234 = vmatpush1.bf16.xpose.msra.mxu0 0
    %235 = vmatprep.subr.bf16.mxu0 0
    %236 = vmatpush1.bf16.xpose.msra.mxu0 0
    %237 = vmatprep.subr.bf16.mxu0 0
    %238 = vmatpush1.bf16.xpose.msra.mxu0 0
    %239 = vmatprep.subr.bf16.mxu0 0
    %240 = vmatpush1.bf16.xpose.msra.mxu0 0
    %241 = vmatprep.subr.bf16.mxu0 0
    %242 = vmatpush1.bf16.xpose.msra.mxu0 0
    %243 = vmatprep.subr.bf16.mxu0 0
    %244 = vmatpush1.bf16.xpose.msra.mxu0 0
    %245 = vmatprep.subr.bf16.mxu0 0
    %246 = vmatpush1.bf16.xpose.msra.mxu0 0
    %247 = vmatprep.subr.bf16.mxu0 0
    %248 = vmatpush1.bf16.xpose.msra.mxu0 0
    %249 = vmatprep.subr.bf16.mxu0 0
    %250 = vmatpush1.bf16.xpose.msra.mxu0 0
    %251 = vmatprep.subr.bf16.mxu0 0
    %252 = vmatpush1.bf16.xpose.msra.mxu0 0
    %253 = vmatprep.subr.bf16.mxu0 0
    %254 = vmatpush1.bf16.xpose.msra.mxu0 0
    %255 = vmatprep.subr.bf16.mxu0 0
    %256 = vmatpush1.bf16.xpose.msra.mxu0 0
    %257 = vmatprep.mubr.bf16.mxu0 0
    %258 = vmatmul.mubr.bf16.gmra.mrb[0].mxu0 %v220
    %v259 = vpop.f32.mrb[0].mxu0
    %v260 = vadd.f32 0.0, %v259
    %v261 = vpop.f32.mrb[0].mxu0
    %v262 = vpop.f32.mrb[0].mxu0
    %v263 = vpop.f32.mrb[0].mxu0
    %264 = vdwg.mxu0
    %266 = vrot.lane.b32.xlu0 %v160, 96
    %v267 = vpop.permute.xlu0 %266
    %v269 = vsel %vm169, %v160, 0
    %v272 = vsel %vm169, %v267, 0
    %274 = vmatprep.subr.bf16.mxu0 0
    %275 = vmatpush1.bf16.xpose.msra.mxu0 %v272
    %276 = vmatprep.subr.bf16.mxu0 0
    %277 = vmatpush1.bf16.xpose.msra.mxu0 0
    %278 = vmatprep.subr.bf16.mxu0 0
    %279 = vmatpush1.bf16.xpose.msra.mxu0 0
    %280 = vmatprep.subr.bf16.mxu0 0
    %281 = vmatpush1.bf16.xpose.msra.mxu0 0
    %282 = vmatprep.subr.bf16.mxu0 0
    %283 = vmatpush1.bf16.xpose.msra.mxu0 0
    %284 = vmatprep.subr.bf16.mxu0 0
    %285 = vmatpush1.bf16.xpose.msra.mxu0 0
    %286 = vmatprep.subr.bf16.mxu0 0
    %287 = vmatpush1.bf16.xpose.msra.mxu0 0
    %288 = vmatprep.subr.bf16.mxu0 0
    %289 = vmatpush1.bf16.xpose.msra.mxu0 0
    %290 = vmatprep.subr.bf16.mxu0 0
    %291 = vmatpush1.bf16.xpose.msra.mxu0 0
    %292 = vmatprep.subr.bf16.mxu0 0
    %293 = vmatpush1.bf16.xpose.msra.mxu0 0
    %294 = vmatprep.subr.bf16.mxu0 0
    %295 = vmatpush1.bf16.xpose.msra.mxu0 0
    %296 = vmatprep.subr.bf16.mxu0 0
    %297 = vmatpush1.bf16.xpose.msra.mxu0 0
    %298 = vmatprep.subr.bf16.mxu0 0
    %299 = vmatpush1.bf16.xpose.msra.mxu0 0
    %300 = vmatprep.subr.bf16.mxu0 0
    %301 = vmatpush1.bf16.xpose.msra.mxu0 0
    %302 = vmatprep.subr.bf16.mxu0 0
    %303 = vmatpush1.bf16.xpose.msra.mxu0 0
    %304 = vmatprep.subr.bf16.mxu0 0
    %305 = vmatpush1.bf16.xpose.msra.mxu0 0
    %306 = vmatprep.mubr.bf16.mxu0 0
    %307 = vmatmul.mubr.bf16.gmra.mrb[0].mxu0 %v269
    %v308 = vpop.f32.mrb[0].mxu0
    %v309 = vadd.f32 0.0, %v308
    %v310 = vpop.f32.mrb[0].mxu0
    %v311 = vpop.f32.mrb[0].mxu0
    %v312 = vpop.f32.mrb[0].mxu0
    %313 = vdwg.mxu0
    %315 = vrot.lane.b32.xlu0 %v161, 96
    %v316 = vpop.permute.xlu0 %315
    %v318 = vsel %vm169, %v161, 0
    %v321 = vsel %vm169, %v316, 0
    %323 = vmatprep.subr.bf16.mxu0 0
    %324 = vmatpush1.bf16.xpose.msra.mxu0 %v321
    %325 = vmatprep.subr.bf16.mxu0 0
    %326 = vmatpush1.bf16.xpose.msra.mxu0 0
    %327 = vmatprep.subr.bf16.mxu0 0
    %328 = vmatpush1.bf16.xpose.msra.mxu0 0
    %329 = vmatprep.subr.bf16.mxu0 0
    %330 = vmatpush1.bf16.xpose.msra.mxu0 0
    %331 = vmatprep.subr.bf16.mxu0 0
    %332 = vmatpush1.bf16.xpose.msra.mxu0 0
    %333 = vmatprep.subr.bf16.mxu0 0
    %334 = vmatpush1.bf16.xpose.msra.mxu0 0
    %335 = vmatprep.subr.bf16.mxu0 0
    %336 = vmatpush1.bf16.xpose.msra.mxu0 0
    %337 = vmatprep.subr.bf16.mxu0 0
    %338 = vmatpush1.bf16.xpose.msra.mxu0 0
    %339 = vmatprep.subr.bf16.mxu0 0
    %340 = vmatpush1.bf16.xpose.msra.mxu0 0
    %341 = vmatprep.subr.bf16.mxu0 0
    %342 = vmatpush1.bf16.xpose.msra.mxu0 0
    %343 = vmatprep.subr.bf16.mxu0 0
    %344 = vmatpush1.bf16.xpose.msra.mxu0 0
    %345 = vmatprep.subr.bf16.mxu0 0
    %346 = vmatpush1.bf16.xpose.msra.mxu0 0
    %347 = vmatprep.subr.bf16.mxu0 0
    %348 = vmatpush1.bf16.xpose.msra.mxu0 0
    %349 = vmatprep.subr.bf16.mxu0 0
    %350 = vmatpush1.bf16.xpose.msra.mxu0 0
    %351 = vmatprep.subr.bf16.mxu0 0
    %352 = vmatpush1.bf16.xpose.msra.mxu0 0
    %353 = vmatprep.subr.bf16.mxu0 0
    %354 = vmatpush1.bf16.xpose.msra.mxu0 0
    %355 = vmatprep.mubr.bf16.mxu0 0
    %356 = vmatmul.mubr.bf16.gmra.mrb[0].mxu0 %v318
    %v357 = vpop.f32.mrb[0].mxu0
    %v358 = vadd.f32 0.0, %v357
    %v359 = vpop.f32.mrb[0].mxu0
    %v360 = vpop.f32.mrb[0].mxu0
    %v361 = vpop.f32.mrb[0].mxu0
    %362 = vdwg.mxu0
    %364 = vrot.lane.b32.xlu0 %v162, 96
    %v365 = vpop.permute.xlu0 %364
    %v367 = vsel %vm169, %v162, 0
    %v370 = vsel %vm169, %v365, 0
    %372 = vmatprep.subr.bf16.mxu0 0
    %373 = vmatpush1.bf16.xpose.msra.mxu0 %v370
    %374 = vmatprep.subr.bf16.mxu0 0
    %375 = vmatpush1.bf16.xpose.msra.mxu0 0
    %376 = vmatprep.subr.bf16.mxu0 0
    %377 = vmatpush1.bf16.xpose.msra.mxu0 0
    %378 = vmatprep.subr.bf16.mxu0 0
    %379 = vmatpush1.bf16.xpose.msra.mxu0 0
    %380 = vmatprep.subr.bf16.mxu0 0
    %381 = vmatpush1.bf16.xpose.msra.mxu0 0
    %382 = vmatprep.subr.bf16.mxu0 0
    %383 = vmatpush1.bf16.xpose.msra.mxu0 0
    %384 = vmatprep.subr.bf16.mxu0 0
    %385 = vmatpush1.bf16.xpose.msra.mxu0 0
    %386 = vmatprep.subr.bf16.mxu0 0
    %387 = vmatpush1.bf16.xpose.msra.mxu0 0
    %388 = vmatprep.subr.bf16.mxu0 0
    %389 = vmatpush1.bf16.xpose.msra.mxu0 0
    %390 = vmatprep.subr.bf16.mxu0 0
    %391 = vmatpush1.bf16.xpose.msra.mxu0 0
    %392 = vmatprep.subr.bf16.mxu0 0
    %393 = vmatpush1.bf16.xpose.msra.mxu0 0
    %394 = vmatprep.subr.bf16.mxu0 0
    %395 = vmatpush1.bf16.xpose.msra.mxu0 0
    %396 = vmatprep.subr.bf16.mxu0 0
    %397 = vmatpush1.bf16.xpose.msra.mxu0 0
    %398 = vmatprep.subr.bf16.mxu0 0
    %399 = vmatpush1.bf16.xpose.msra.mxu0 0
    %400 = vmatprep.subr.bf16.mxu0 0
    %401 = vmatpush1.bf16.xpose.msra.mxu0 0
    %402 = vmatprep.subr.bf16.mxu0 0
    %403 = vmatpush1.bf16.xpose.msra.mxu0 0
    %404 = vmatprep.mubr.bf16.mxu0 0
    %405 = vmatmul.mubr.bf16.gmra.mrb[0].mxu0 %v367
    %v406 = vpop.f32.mrb[0].mxu0
    %v407 = vadd.f32 0.0, %v406
    %v408 = vpop.f32.mrb[0].mxu0
    %v409 = vpop.f32.mrb[0].mxu0
    %v410 = vpop.f32.mrb[0].mxu0
    %411 = vdwg.mxu0
    %413 = vrot.lane.b32.xlu0 %v163, 96
    %v414 = vpop.permute.xlu0 %413
    %v416 = vsel %vm169, %v163, 0
    %v419 = vsel %vm169, %v414, 0
    %421 = vmatprep.subr.bf16.mxu0 0
    %422 = vmatpush1.bf16.xpose.msra.mxu0 %v419
    %423 = vmatprep.subr.bf16.mxu0 0
    %424 = vmatpush1.bf16.xpose.msra.mxu0 0
    %425 = vmatprep.subr.bf16.mxu0 0
    %426 = vmatpush1.bf16.xpose.msra.mxu0 0
    %427 = vmatprep.subr.bf16.mxu0 0
    %428 = vmatpush1.bf16.xpose.msra.mxu0 0
    %429 = vmatprep.subr.bf16.mxu0 0
    %430 = vmatpush1.bf16.xpose.msra.mxu0 0
    %431 = vmatprep.subr.bf16.mxu0 0
    %432 = vmatpush1.bf16.xpose.msra.mxu0 0
    %433 = vmatprep.subr.bf16.mxu0 0
    %434 = vmatpush1.bf16.xpose.msra.mxu0 0
    %435 = vmatprep.subr.bf16.mxu0 0
    %436 = vmatpush1.bf16.xpose.msra.mxu0 0
    %437 = vmatprep.subr.bf16.mxu0 0
    %438 = vmatpush1.bf16.xpose.msra.mxu0 0
    %439 = vmatprep.subr.bf16.mxu0 0
    %440 = vmatpush1.bf16.xpose.msra.mxu0 0
    %441 = vmatprep.subr.bf16.mxu0 0
    %442 = vmatpush1.bf16.xpose.msra.mxu0 0
    %443 = vmatprep.subr.bf16.mxu0 0
    %444 = vmatpush1.bf16.xpose.msra.mxu0 0
    %445 = vmatprep.subr.bf16.mxu0 0
    %446 = vmatpush1.bf16.xpose.msra.mxu0 0
    %447 = vmatprep.subr.bf16.mxu0 0
    %448 = vmatpush1.bf16.xpose.msra.mxu0 0
    %449 = vmatprep.subr.bf16.mxu0 0
    %450 = vmatpush1.bf16.xpose.msra.mxu0 0
    %451 = vmatprep.subr.bf16.mxu0 0
    %452 = vmatpush1.bf16.xpose.msra.mxu0 0
    %453 = vmatprep.mubr.bf16.mxu0 0
    %454 = vmatmul.mubr.bf16.gmra.mrb[0].mxu0 %v416
    %v455 = vpop.f32.mrb[0].mxu0
    %v456 = vadd.f32 0.0, %v455
    %v457 = vpop.f32.mrb[0].mxu0
    %v458 = vpop.f32.mrb[0].mxu0
    %v459 = vpop.f32.mrb[0].mxu0
    %460 = vdwg.mxu0
    %462 = vrot.lane.b32.xlu0 %v164, 96
    %v463 = vpop.permute.xlu0 %462
    %v465 = vsel %vm169, %v164, 0
    %v468 = vsel %vm169, %v463, 0
    %470 = vmatprep.subr.bf16.mxu0 0
    %471 = vmatpush1.bf16.xpose.msra.mxu0 %v468
    %472 = vmatprep.subr.bf16.mxu0 0
    %473 = vmatpush1.bf16.xpose.msra.mxu0 0
    %474 = vmatprep.subr.bf16.mxu0 0
    %475 = vmatpush1.bf16.xpose.msra.mxu0 0
    %476 = vmatprep.subr.bf16.mxu0 0
    %477 = vmatpush1.bf16.xpose.msra.mxu0 0
    %478 = vmatprep.subr.bf16.mxu0 0
    %479 = vmatpush1.bf16.xpose.msra.mxu0 0
    %480 = vmatprep.subr.bf16.mxu0 0
    %481 = vmatpush1.bf16.xpose.msra.mxu0 0
    %482 = vmatprep.subr.bf16.mxu0 0
    %483 = vmatpush1.bf16.xpose.msra.mxu0 0
    %484 = vmatprep.subr.bf16.mxu0 0
    %485 = vmatpush1.bf16.xpose.msra.mxu0 0
    %486 = vmatprep.subr.bf16.mxu0 0
    %487 = vmatpush1.bf16.xpose.msra.mxu0 0
    %488 = vmatprep.subr.bf16.mxu0 0
    %489 = vmatpush1.bf16.xpose.msra.mxu0 0
    %490 = vmatprep.subr.bf16.mxu0 0
    %491 = vmatpush1.bf16.xpose.msra.mxu0 0
    %492 = vmatprep.subr.bf16.mxu0 0
    %493 = vmatpush1.bf16.xpose.msra.mxu0 0
    %494 = vmatprep.subr.bf16.mxu0 0
    %495 = vmatpush1.bf16.xpose.msra.mxu0 0
    %496 = vmatprep.subr.bf16.mxu0 0
    %497 = vmatpush1.bf16.xpose.msra.mxu0 0
    %498 = vmatprep.subr.bf16.mxu0 0
    %499 = vmatpush1.bf16.xpose.msra.mxu0 0
    %500 = vmatprep.subr.bf16.mxu0 0
    %501 = vmatpush1.bf16.xpose.msra.mxu0 0
    %502 = vmatprep.mubr.bf16.mxu0 0
    %503 = vmatmul.mubr.bf16.gmra.mrb[0].mxu0 %v465
    %v504 = vpop.f32.mrb[0].mxu0
    %v505 = vadd.f32 0.0, %v504
    %v506 = vpop.f32.mrb[0].mxu0
    %v507 = vpop.f32.mrb[0].mxu0
    %v508 = vpop.f32.mrb[0].mxu0
    %509 = vdwg.mxu0
    %511 = vrot.lane.b32.xlu0 %v165, 96
    %v512 = vpop.permute.xlu0 %511
    %v514 = vsel %vm169, %v165, 0
    %v517 = vsel %vm169, %v512, 0
    %519 = vmatprep.subr.bf16.mxu0 0
    %520 = vmatpush1.bf16.xpose.msra.mxu0 %v517
    %521 = vmatprep.subr.bf16.mxu0 0
    %522 = vmatpush1.bf16.xpose.msra.mxu0 0
    %523 = vmatprep.subr.bf16.mxu0 0
    %524 = vmatpush1.bf16.xpose.msra.mxu0 0
    %525 = vmatprep.subr.bf16.mxu0 0
    %526 = vmatpush1.bf16.xpose.msra.mxu0 0
    %527 = vmatprep.subr.bf16.mxu0 0
    %528 = vmatpush1.bf16.xpose.msra.mxu0 0
    %529 = vmatprep.subr.bf16.mxu0 0
    %530 = vmatpush1.bf16.xpose.msra.mxu0 0
    %531 = vmatprep.subr.bf16.mxu0 0
    %532 = vmatpush1.bf16.xpose.msra.mxu0 0
    %533 = vmatprep.subr.bf16.mxu0 0
    %534 = vmatpush1.bf16.xpose.msra.mxu0 0
    %535 = vmatprep.subr.bf16.mxu0 0
    %536 = vmatpush1.bf16.xpose.msra.mxu0 0
    %537 = vmatprep.subr.bf16.mxu0 0
    %538 = vmatpush1.bf16.xpose.msra.mxu0 0
    %539 = vmatprep.subr.bf16.mxu0 0
    %540 = vmatpush1.bf16.xpose.msra.mxu0 0
    %541 = vmatprep.subr.bf16.mxu0 0
    %542 = vmatpush1.bf16.xpose.msra.mxu0 0
    %543 = vmatprep.subr.bf16.mxu0 0
    %544 = vmatpush1.bf16.xpose.msra.mxu0 0
    %545 = vmatprep.subr.bf16.mxu0 0
    %546 = vmatpush1.bf16.xpose.msra.mxu0 0
    %547 = vmatprep.subr.bf16.mxu0 0
    %548 = vmatpush1.bf16.xpose.msra.mxu0 0
    %549 = vmatprep.subr.bf16.mxu0 0
    %550 = vmatpush1.bf16.xpose.msra.mxu0 0
    %551 = vmatprep.mubr.bf16.mxu0 0
    %552 = vmatmul.mubr.bf16.gmra.mrb[0].mxu0 %v514
    %v553 = vpop.f32.mrb[0].mxu0
    %v554 = vadd.f32 0.0, %v553
    %v555 = vpop.f32.mrb[0].mxu0
    %v556 = vpop.f32.mrb[0].mxu0
    %v557 = vpop.f32.mrb[0].mxu0
    %558 = vdwg.mxu0
    %v559 = vmul.f32 %v211, 0.35355338
    %v560 = vmul.f32 %v260, 0.35355338
    %v561 = vmul.f32 %v309, 0.35355338
    %v562 = vmul.f32 %v358, 0.35355338
    %v563 = vmul.f32 %v407, 0.35355338
    %v564 = vmul.f32 %v456, 0.35355338
    %v565 = vmul.f32 %v505, 0.35355338
    %v566 = vmul.f32 %v554, 0.35355338
    %v567 = vsel %vm169, %v559, -inf
    %568 = vmax.xlane.f32.xlu0 %v567
    %v569 = vpop.xlane.xlu0 %568
    %v570 = vsel %vm169, %v560, -inf
    %571 = vmax.xlane.f32.xlu0 %v570
    %v572 = vpop.xlane.xlu0 %571
    %v573 = vsel %vm169, %v561, -inf
    %574 = vmax.xlane.f32.xlu0 %v573
    %v575 = vpop.xlane.xlu0 %574
    %v576 = vsel %vm169, %v562, -inf
    %577 = vmax.xlane.f32.xlu0 %v576
    %v578 = vpop.xlane.xlu0 %577
    %v579 = vsel %vm169, %v563, -inf
    %580 = vmax.xlane.f32.xlu0 %v579
    %v581 = vpop.xlane.xlu0 %580
    %v582 = vsel %vm169, %v564, -inf
    %583 = vmax.xlane.f32.xlu0 %v582
    %v584 = vpop.xlane.xlu0 %583
    %v585 = vsel %vm169, %v565, -inf
    %586 = vmax.xlane.f32.xlu0 %v585
    %v587 = vpop.xlane.xlu0 %586
    %v588 = vsel %vm169, %v566, -inf
    %589 = vmax.xlane.f32.xlu0 %v588
    %v590 = vpop.xlane.xlu0 %589
    %v591 = vsub.f32 %v559, %v569
    %v592 = vsub.f32 %v560, %v572
    %v593 = vsub.f32 %v561, %v575
    %v594 = vsub.f32 %v562, %v578
    %v595 = vsub.f32 %v563, %v581
    %v596 = vsub.f32 %v564, %v584
    %v597 = vsub.f32 %v565, %v587
    %v598 = vsub.f32 %v566, %v590
    %v599 = vmul.f32 %v591, 1.442695
    %v600 = vpow.pop %v599
    %v601 = vmul.f32 %v592, 1.442695
    %v602 = vpow.pop %v601
    %v603 = vmul.f32 %v593, 1.442695
    %v604 = vpow.pop %v603
    %v605 = vmul.f32 %v594, 1.442695
    %v606 = vpow.pop %v605
    %v607 = vmul.f32 %v595, 1.442695
    %v608 = vpow.pop %v607
    %v609 = vmul.f32 %v596, 1.442695
    %v610 = vpow.pop %v609
    %v611 = vmul.f32 %v597, 1.442695
    %v612 = vpow.pop %v611
    %v613 = vmul.f32 %v598, 1.442695
    %v614 = vpow.pop %v613
    %v615 = vsel %vm169, %v600, 0.0
    %616 = vadd.xlane.f32.xlu0 %v615
    %v617 = vpop.xlane.xlu0 %616
    %v618 = vsel %vm169, %v602, 0.0
    %619 = vadd.xlane.f32.xlu0 %v618
    %v620 = vpop.xlane.xlu0 %619
    %v621 = vsel %vm169, %v604, 0.0
    %622 = vadd.xlane.f32.xlu0 %v621
    %v623 = vpop.xlane.xlu0 %622
    %v624 = vsel %vm169, %v606, 0.0
    %625 = vadd.xlane.f32.xlu0 %v624
    %v626 = vpop.xlane.xlu0 %625
    %v627 = vsel %vm169, %v608, 0.0
    %628 = vadd.xlane.f32.xlu0 %v627
    %v629 = vpop.xlane.xlu0 %628
    %v630 = vsel %vm169, %v610, 0.0
    %631 = vadd.xlane.f32.xlu0 %v630
    %v632 = vpop.xlane.xlu0 %631
    %v633 = vsel %vm169, %v612, 0.0
    %634 = vadd.xlane.f32.xlu0 %v633
    %v635 = vpop.xlane.xlu0 %634
    %v636 = vsel %vm169, %v614, 0.0
    %637 = vadd.xlane.f32.xlu0 %v636
    %v638 = vpop.xlane.xlu0 %637
    %v639 = vrcp.pop %v617
    %v640 = vrcp.pop %v620
    %v641 = vrcp.pop %v623
    %v642 = vrcp.pop %v626
    %v643 = vrcp.pop %v629
    %v644 = vrcp.pop %v632
    %v645 = vrcp.pop %v635
    %v646 = vrcp.pop %v638
    %v647 = vmul.f32 %v600, %v639
    %v648 = vmul.f32 %v602, %v640
    %v649 = vmul.f32 %v604, %v641
    %v650 = vmul.f32 %v606, %v642
    %v651 = vmul.f32 %v608, %v643
    %v652 = vmul.f32 %v610, %v644
    %v653 = vmul.f32 %v612, %v645
    %v654 = vmul.f32 %v614, %v646
    %v655 = vpack.c.bf16 %v647, %v647
    %v656 = vpack.c.bf16 %v648, %v648
    %v657 = vpack.c.bf16 %v649, %v649
    %v658 = vpack.c.bf16 %v650, %v650
    %v659 = vpack.c.bf16 %v651, %v651
    %v660 = vpack.c.bf16 %v652, %v652
    %v661 = vpack.c.bf16 %v653, %v653
    %v662 = vpack.c.bf16 %v654, %v654
    %663 = vrot.lane.b32.xlu0 %v158, 64
    %v664 = vpop.permute.xlu0 %663
    %v666 = vsel %vm169, %v655, 0
    %vm668 = vcmask 1043456
    %v670 = vsel %vm668, %v664, 0
    %672 = vmatprep.subr.bf16.mxu0 0
    %673 = vmatpush1.bf16.msra.mxu0 %v670
    %674 = vmatprep.subr.bf16.mxu0 0
    %675 = vmatpush1.bf16.msra.mxu0 0
    %676 = vmatprep.subr.bf16.mxu0 0
    %677 = vmatpush1.bf16.msra.mxu0 0
    %678 = vmatprep.subr.bf16.mxu0 0
    %679 = vmatpush1.bf16.msra.mxu0 0
    %680 = vmatprep.subr.bf16.mxu0 0
    %681 = vmatpush1.bf16.msra.mxu0 0
    %682 = vmatprep.subr.bf16.mxu0 0
    %683 = vmatpush1.bf16.msra.mxu0 0
    %684 = vmatprep.subr.bf16.mxu0 0
    %685 = vmatpush1.bf16.msra.mxu0 0
    %686 = vmatprep.subr.bf16.mxu0 0
    %687 = vmatpush1.bf16.msra.mxu0 0
    %688 = vmatprep.subr.bf16.mxu0 0
    %689 = vmatpush1.bf16.msra.mxu0 0
    %690 = vmatprep.subr.bf16.mxu0 0
    %691 = vmatpush1.bf16.msra.mxu0 0
    %692 = vmatprep.subr.bf16.mxu0 0
    %693 = vmatpush1.bf16.msra.mxu0 0
    %694 = vmatprep.subr.bf16.mxu0 0
    %695 = vmatpush1.bf16.msra.mxu0 0
    %696 = vmatprep.subr.bf16.mxu0 0
    %697 = vmatpush1.bf16.msra.mxu0 0
    %698 = vmatprep.subr.bf16.mxu0 0
    %699 = vmatpush1.bf16.msra.mxu0 0
    %700 = vmatprep.subr.bf16.mxu0 0
    %701 = vmatpush1.bf16.msra.mxu0 0
    %702 = vmatprep.subr.bf16.mxu0 0
    %703 = vmatpush1.bf16.msra.mxu0 0
    %704 = vmatprep.mubr.bf16.mxu0 0
    %705 = vmatmul.mubr.bf16.gmra.mrb[0].mxu0 %v666
    %v706 = vpop.f32.mrb[0].mxu0
    %v707 = vadd.f32 0.0, %v706
    %v708 = vpop.f32.mrb[0].mxu0
    %v709 = vpop.f32.mrb[0].mxu0
    %v710 = vpop.f32.mrb[0].mxu0
    %711 = vdwg.mxu0
    %712 = vrot.lane.b32.xlu0 %v159, 64
    %v713 = vpop.permute.xlu0 %712
    %v715 = vsel %vm169, %v656, 0
    %v718 = vsel %vm668, %v713, 0
    %720 = vmatprep.subr.bf16.mxu0 0
    %721 = vmatpush1.bf16.msra.mxu0 %v718
    %722 = vmatprep.subr.bf16.mxu0 0
    %723 = vmatpush1.bf16.msra.mxu0 0
    %724 = vmatprep.subr.bf16.mxu0 0
    %725 = vmatpush1.bf16.msra.mxu0 0
    %726 = vmatprep.subr.bf16.mxu0 0
    %727 = vmatpush1.bf16.msra.mxu0 0
    %728 = vmatprep.subr.bf16.mxu0 0
    %729 = vmatpush1.bf16.msra.mxu0 0
    %730 = vmatprep.subr.bf16.mxu0 0
    %731 = vmatpush1.bf16.msra.mxu0 0
    %732 = vmatprep.subr.bf16.mxu0 0
    %733 = vmatpush1.bf16.msra.mxu0 0
    %734 = vmatprep.subr.bf16.mxu0 0
    %735 = vmatpush1.bf16.msra.mxu0 0
    %736 = vmatprep.subr.bf16.mxu0 0
    %737 = vmatpush1.bf16.msra.mxu0 0
    %738 = vmatprep.subr.bf16.mxu0 0
    %739 = vmatpush1.bf16.msra.mxu0 0
    %740 = vmatprep.subr.bf16.mxu0 0
    %741 = vmatpush1.bf16.msra.mxu0 0
    %742 = vmatprep.subr.bf16.mxu0 0
    %743 = vmatpush1.bf16.msra.mxu0 0
    %744 = vmatprep.subr.bf16.mxu0 0
    %745 = vmatpush1.bf16.msra.mxu0 0
    %746 = vmatprep.subr.bf16.mxu0 0
    %747 = vmatpush1.bf16.msra.mxu0 0
    %748 = vmatprep.subr.bf16.mxu0 0
    %749 = vmatpush1.bf16.msra.mxu0 0
    %750 = vmatprep.subr.bf16.mxu0 0
    %751 = vmatpush1.bf16.msra.mxu0 0
    %752 = vmatprep.mubr.bf16.mxu0 0
    %753 = vmatmul.mubr.bf16.gmra.mrb[0].mxu0 %v715
    %v754 = vpop.f32.mrb[0].mxu0
    %v755 = vadd.f32 0.0, %v754
    %v756 = vpop.f32.mrb[0].mxu0
    %v757 = vpop.f32.mrb[0].mxu0
    %v758 = vpop.f32.mrb[0].mxu0
    %759 = vdwg.mxu0
    %760 = vrot.lane.b32.xlu0 %v160, 64
    %v761 = vpop.permute.xlu0 %760
    %v763 = vsel %vm169, %v657, 0
    %v766 = vsel %vm668, %v761, 0
    %768 = vmatprep.subr.bf16.mxu0 0
    %769 = vmatpush1.bf16.msra.mxu0 %v766
    %770 = vmatprep.subr.bf16.mxu0 0
    %771 = vmatpush1.bf16.msra.mxu0 0
    %772 = vmatprep.subr.bf16.mxu0 0
    %773 = vmatpush1.bf16.msra.mxu0 0
    %774 = vmatprep.subr.bf16.mxu0 0
    %775 = vmatpush1.bf16.msra.mxu0 0
    %776 = vmatprep.subr.bf16.mxu0 0
    %777 = vmatpush1.bf16.msra.mxu0 0
    %778 = vmatprep.subr.bf16.mxu0 0
    %779 = vmatpush1.bf16.msra.mxu0 0
    %780 = vmatprep.subr.bf16.mxu0 0
    %781 = vmatpush1.bf16.msra.mxu0 0
    %782 = vmatprep.subr.bf16.mxu0 0
    %783 = vmatpush1.bf16.msra.mxu0 0
    %784 = vmatprep.subr.bf16.mxu0 0
    %785 = vmatpush1.bf16.msra.mxu0 0
    %786 = vmatprep.subr.bf16.mxu0 0
    %787 = vmatpush1.bf16.msra.mxu0 0
    %788 = vmatprep.subr.bf16.mxu0 0
    %789 = vmatpush1.bf16.msra.mxu0 0
    %790 = vmatprep.subr.bf16.mxu0 0
    %791 = vmatpush1.bf16.msra.mxu0 0
    %792 = vmatprep.subr.bf16.mxu0 0
    %793 = vmatpush1.bf16.msra.mxu0 0
    %794 = vmatprep.subr.bf16.mxu0 0
    %795 = vmatpush1.bf16.msra.mxu0 0
    %796 = vmatprep.subr.bf16.mxu0 0
    %797 = vmatpush1.bf16.msra.mxu0 0
    %798 = vmatprep.subr.bf16.mxu0 0
    %799 = vmatpush1.bf16.msra.mxu0 0
    %800 = vmatprep.mubr.bf16.mxu0 0
    %801 = vmatmul.mubr.bf16.gmra.mrb[0].mxu0 %v763
    %v802 = vpop.f32.mrb[0].mxu0
    %v803 = vadd.f32 0.0, %v802
    %v804 = vpop.f32.mrb[0].mxu0
    %v805 = vpop.f32.mrb[0].mxu0
    %v806 = vpop.f32.mrb[0].mxu0
    %807 = vdwg.mxu0
    %808 = vrot.lane.b32.xlu0 %v161, 64
    %v809 = vpop.permute.xlu0 %808
    %v811 = vsel %vm169, %v658, 0
    %v814 = vsel %vm668, %v809, 0
    %816 = vmatprep.subr.bf16.mxu0 0
    %817 = vmatpush1.bf16.msra.mxu0 %v814
    %818 = vmatprep.subr.bf16.mxu0 0
    %819 = vmatpush1.bf16.msra.mxu0 0
    %820 = vmatprep.subr.bf16.mxu0 0
    %821 = vmatpush1.bf16.msra.mxu0 0
    %822 = vmatprep.subr.bf16.mxu0 0
    %823 = vmatpush1.bf16.msra.mxu0 0
    %824 = vmatprep.subr.bf16.mxu0 0
    %825 = vmatpush1.bf16.msra.mxu0 0
    %826 = vmatprep.subr.bf16.mxu0 0
    %827 = vmatpush1.bf16.msra.mxu0 0
    %828 = vmatprep.subr.bf16.mxu0 0
    %829 = vmatpush1.bf16.msra.mxu0 0
    %830 = vmatprep.subr.bf16.mxu0 0
    %831 = vmatpush1.bf16.msra.mxu0 0
    %832 = vmatprep.subr.bf16.mxu0 0
    %833 = vmatpush1.bf16.msra.mxu0 0
    %834 = vmatprep.subr.bf16.mxu0 0
    %835 = vmatpush1.bf16.msra.mxu0 0
    %836 = vmatprep.subr.bf16.mxu0 0
    %837 = vmatpush1.bf16.msra.mxu0 0
    %838 = vmatprep.subr.bf16.mxu0 0
    %839 = vmatpush1.bf16.msra.mxu0 0
    %840 = vmatprep.subr.bf16.mxu0 0
    %841 = vmatpush1.bf16.msra.mxu0 0
    %842 = vmatprep.subr.bf16.mxu0 0
    %843 = vmatpush1.bf16.msra.mxu0 0
    %844 = vmatprep.subr.bf16.mxu0 0
    %845 = vmatpush1.bf16.msra.mxu0 0
    %846 = vmatprep.subr.bf16.mxu0 0
    %847 = vmatpush1.bf16.msra.mxu0 0
    %848 = vmatprep.mubr.bf16.mxu0 0
    %849 = vmatmul.mubr.bf16.gmra.mrb[0].mxu0 %v811
    %v850 = vpop.f32.mrb[0].mxu0
    %v851 = vadd.f32 0.0, %v850
    %v852 = vpop.f32.mrb[0].mxu0
    %v853 = vpop.f32.mrb[0].mxu0
    %v854 = vpop.f32.mrb[0].mxu0
    %855 = vdwg.mxu0
    %856 = vrot.lane.b32.xlu0 %v162, 64
    %v857 = vpop.permute.xlu0 %856
    %v859 = vsel %vm169, %v659, 0
    %v862 = vsel %vm668, %v857, 0
    %864 = vmatprep.subr.bf16.mxu0 0
    %865 = vmatpush1.bf16.msra.mxu0 %v862
    %866 = vmatprep.subr.bf16.mxu0 0
    %867 = vmatpush1.bf16.msra.mxu0 0
    %868 = vmatprep.subr.bf16.mxu0 0
    %869 = vmatpush1.bf16.msra.mxu0 0
    %870 = vmatprep.subr.bf16.mxu0 0
    %871 = vmatpush1.bf16.msra.mxu0 0
    %872 = vmatprep.subr.bf16.mxu0 0
    %873 = vmatpush1.bf16.msra.mxu0 0
    %874 = vmatprep.subr.bf16.mxu0 0
    %875 = vmatpush1.bf16.msra.mxu0 0
    %876 = vmatprep.subr.bf16.mxu0 0
    %877 = vmatpush1.bf16.msra.mxu0 0
    %878 = vmatprep.subr.bf16.mxu0 0
    %879 = vmatpush1.bf16.msra.mxu0 0
    %880 = vmatprep.subr.bf16.mxu0 0
    %881 = vmatpush1.bf16.msra.mxu0 0
    %882 = vmatprep.subr.bf16.mxu0 0
    %883 = vmatpush1.bf16.msra.mxu0 0
    %884 = vmatprep.subr.bf16.mxu0 0
    %885 = vmatpush1.bf16.msra.mxu0 0
    %886 = vmatprep.subr.bf16.mxu0 0
    %887 = vmatpush1.bf16.msra.mxu0 0
    %888 = vmatprep.subr.bf16.mxu0 0
    %889 = vmatpush1.bf16.msra.mxu0 0
    %890 = vmatprep.subr.bf16.mxu0 0
    %891 = vmatpush1.bf16.msra.mxu0 0
    %892 = vmatprep.subr.bf16.mxu0 0
    %893 = vmatpush1.bf16.msra.mxu0 0
    %894 = vmatprep.subr.bf16.mxu0 0
    %895 = vmatpush1.bf16.msra.mxu0 0
    %896 = vmatprep.mubr.bf16.mxu0 0
    %897 = vmatmul.mubr.bf16.gmra.mrb[0].mxu0 %v859
    %v898 = vpop.f32.mrb[0].mxu0
    %v899 = vadd.f32 0.0, %v898
    %v900 = vpop.f32.mrb[0].mxu0
    %v901 = vpop.f32.mrb[0].mxu0
    %v902 = vpop.f32.mrb[0].mxu0
    %903 = vdwg.mxu0
    %904 = vrot.lane.b32.xlu0 %v163, 64
    %v905 = vpop.permute.xlu0 %904
    %v907 = vsel %vm169, %v660, 0
    %v910 = vsel %vm668, %v905, 0
    %912 = vmatprep.subr.bf16.mxu0 0
    %913 = vmatpush1.bf16.msra.mxu0 %v910
    %914 = vmatprep.subr.bf16.mxu0 0
    %915 = vmatpush1.bf16.msra.mxu0 0
    %916 = vmatprep.subr.bf16.mxu0 0
    %917 = vmatpush1.bf16.msra.mxu0 0
    %918 = vmatprep.subr.bf16.mxu0 0
    %919 = vmatpush1.bf16.msra.mxu0 0
    %920 = vmatprep.subr.bf16.mxu0 0
    %921 = vmatpush1.bf16.msra.mxu0 0
    %922 = vmatprep.subr.bf16.mxu0 0
    %923 = vmatpush1.bf16.msra.mxu0 0
    %924 = vmatprep.subr.bf16.mxu0 0
    %925 = vmatpush1.bf16.msra.mxu0 0
    %926 = vmatprep.subr.bf16.mxu0 0
    %927 = vmatpush1.bf16.msra.mxu0 0
    %928 = vmatprep.subr.bf16.mxu0 0
    %929 = vmatpush1.bf16.msra.mxu0 0
    %930 = vmatprep.subr.bf16.mxu0 0
    %931 = vmatpush1.bf16.msra.mxu0 0
    %932 = vmatprep.subr.bf16.mxu0 0
    %933 = vmatpush1.bf16.msra.mxu0 0
    %934 = vmatprep.subr.bf16.mxu0 0
    %935 = vmatpush1.bf16.msra.mxu0 0
    %936 = vmatprep.subr.bf16.mxu0 0
    %937 = vmatpush1.bf16.msra.mxu0 0
    %938 = vmatprep.subr.bf16.mxu0 0
    %939 = vmatpush1.bf16.msra.mxu0 0
    %940 = vmatprep.subr.bf16.mxu0 0
    %941 = vmatpush1.bf16.msra.mxu0 0
    %942 = vmatprep.subr.bf16.mxu0 0
    %943 = vmatpush1.bf16.msra.mxu0 0
    %944 = vmatprep.mubr.bf16.mxu0 0
    %945 = vmatmul.mubr.bf16.gmra.mrb[0].mxu0 %v907
    %v946 = vpop.f32.mrb[0].mxu0
    %v947 = vadd.f32 0.0, %v946
    %v948 = vpop.f32.mrb[0].mxu0
    %v949 = vpop.f32.mrb[0].mxu0
    %v950 = vpop.f32.mrb[0].mxu0
    %951 = vdwg.mxu0
    %952 = vrot.lane.b32.xlu0 %v164, 64
    %v953 = vpop.permute.xlu0 %952
    %v955 = vsel %vm169, %v661, 0
    %v958 = vsel %vm668, %v953, 0
    %960 = vmatprep.subr.bf16.mxu0 0
    %961 = vmatpush1.bf16.msra.mxu0 %v958
    %962 = vmatprep.subr.bf16.mxu0 0
    %963 = vmatpush1.bf16.msra.mxu0 0
    %964 = vmatprep.subr.bf16.mxu0 0
    %965 = vmatpush1.bf16.msra.mxu0 0
    %966 = vmatprep.subr.bf16.mxu0 0
    %967 = vmatpush1.bf16.msra.mxu0 0
    %968 = vmatprep.subr.bf16.mxu0 0
    %969 = vmatpush1.bf16.msra.mxu0 0
    %970 = vmatprep.subr.bf16.mxu0 0
    %971 = vmatpush1.bf16.msra.mxu0 0
    %972 = vmatprep.subr.bf16.mxu0 0
    %973 = vmatpush1.bf16.msra.mxu0 0
    %974 = vmatprep.subr.bf16.mxu0 0
    %975 = vmatpush1.bf16.msra.mxu0 0
    %976 = vmatprep.subr.bf16.mxu0 0
    %977 = vmatpush1.bf16.msra.mxu0 0
    %978 = vmatprep.subr.bf16.mxu0 0
    %979 = vmatpush1.bf16.msra.mxu0 0
    %980 = vmatprep.subr.bf16.mxu0 0
    %981 = vmatpush1.bf16.msra.mxu0 0
    %982 = vmatprep.subr.bf16.mxu0 0
    %983 = vmatpush1.bf16.msra.mxu0 0
    %984 = vmatprep.subr.bf16.mxu0 0
    %985 = vmatpush1.bf16.msra.mxu0 0
    %986 = vmatprep.subr.bf16.mxu0 0
    %987 = vmatpush1.bf16.msra.mxu0 0
    %988 = vmatprep.subr.bf16.mxu0 0
    %989 = vmatpush1.bf16.msra.mxu0 0
    %990 = vmatprep.subr.bf16.mxu0 0
    %991 = vmatpush1.bf16.msra.mxu0 0
    %992 = vmatprep.mubr.bf16.mxu0 0
    %993 = vmatmul.mubr.bf16.gmra.mrb[0].mxu0 %v955
    %v994 = vpop.f32.mrb[0].mxu0
    %v995 = vadd.f32 0.0, %v994
    %v996 = vpop.f32.mrb[0].mxu0
    %v997 = vpop.f32.mrb[0].mxu0
    %v998 = vpop.f32.mrb[0].mxu0
    %999 = vdwg.mxu0
    %1000 = vrot.lane.b32.xlu0 %v165, 64
    %v1001 = vpop.permute.xlu0 %1000
    %v1003 = vsel %vm169, %v662, 0
    %v1006 = vsel %vm668, %v1001, 0
    %1008 = vmatprep.subr.bf16.mxu0 0
    %1009 = vmatpush1.bf16.msra.mxu0 %v1006
    %1010 = vmatprep.subr.bf16.mxu0 0
    %1011 = vmatpush1.bf16.msra.mxu0 0
    %1012 = vmatprep.subr.bf16.mxu0 0
    %1013 = vmatpush1.bf16.msra.mxu0 0
    %1014 = vmatprep.subr.bf16.mxu0 0
    %1015 = vmatpush1.bf16.msra.mxu0 0
    %1016 = vmatprep.subr.bf16.mxu0 0
    %1017 = vmatpush1.bf16.msra.mxu0 0
    %1018 = vmatprep.subr.bf16.mxu0 0
    %1019 = vmatpush1.bf16.msra.mxu0 0
    %1020 = vmatprep.subr.bf16.mxu0 0
    %1021 = vmatpush1.bf16.msra.mxu0 0
    %1022 = vmatprep.subr.bf16.mxu0 0
    %1023 = vmatpush1.bf16.msra.mxu0 0
    %1024 = vmatprep.subr.bf16.mxu0 0
    %1025 = vmatpush1.bf16.msra.mxu0 0
    %1026 = vmatprep.subr.bf16.mxu0 0
    %1027 = vmatpush1.bf16.msra.mxu0 0
    %1028 = vmatprep.subr.bf16.mxu0 0
    %1029 = vmatpush1.bf16.msra.mxu0 0
    %1030 = vmatprep.subr.bf16.mxu0 0
    %1031 = vmatpush1.bf16.msra.mxu0 0
    %1032 = vmatprep.subr.bf16.mxu0 0
    %1033 = vmatpush1.bf16.msra.mxu0 0
    %1034 = vmatprep.subr.bf16.mxu0 0
    %1035 = vmatpush1.bf16.msra.mxu0 0
    %1036 = vmatprep.subr.bf16.mxu0 0
    %1037 = vmatpush1.bf16.msra.mxu0 0
    %1038 = vmatprep.subr.bf16.mxu0 0
    %1039 = vmatpush1.bf16.msra.mxu0 0
    %1040 = vmatprep.mubr.bf16.mxu0 0
    %1041 = vmatmul.mubr.bf16.gmra.mrb[0].mxu0 %v1003
    %v1042 = vpop.f32.mrb[0].mxu0
    %v1043 = vadd.f32 0.0, %v1042
    %v1044 = vpop.f32.mrb[0].mxu0
    %v1045 = vpop.f32.mrb[0].mxu0
    %v1046 = vpop.f32.mrb[0].mxu0
    %1047 = vdwg.mxu0
    %1050 = vrot.lane.b32.xlu0 %v803, 8
    %v1051 = vpop.permute.xlu0 %1050
    %1052 = vrot.lane.b32.xlu0 %v851, 8
    %v1053 = vpop.permute.xlu0 %1052
    %1058 = vrot.lane.b32.xlu0 %v899, 16
    %v1059 = vpop.permute.xlu0 %1058
    %1060 = vrot.lane.b32.xlu0 %v947, 16
    %v1061 = vpop.permute.xlu0 %1060
    %1066 = vrot.lane.b32.xlu0 %v995, 24
    %v1067 = vpop.permute.xlu0 %1066
    %1068 = vrot.lane.b32.xlu0 %v1043, 24
    %v1069 = vpop.permute.xlu0 %1068
    %v1072 = vsel %vm169, %v707, %v1051
    %v1073 = vsel %vm169, %v755, %v1053
    %vm1074 = vcmask 130048
    %v1075 = vsel %vm1074, %v1072, %v1059
    %v1076 = vsel %vm1074, %v1073, %v1061
    %vm1077 = vcmask 195584
    %v1078 = vsel %vm1077, %v1075, %v1067
    %v1079 = vsel %vm1077, %v1076, %v1069
    %v1080 = vpack.c.bf16 %v1079, %v1078
    %v1081 = vld [vmem:[#allocation7] sm:$0xf]
    %v1082 = vld [vmem:[#allocation7 + $0x4] sm:$0xf]
    %v1083 = vld [vmem:[#allocation7 + $0x8] sm:$0xf]
    %v1084 = vld [vmem:[#allocation7 + $0xc] sm:$0xf]
    %v1085 = vld [vmem:[%s4] sm:$0x1]
    %v1087 = vlaneseq
    %v1088 = vshrl.u32 %v1087, 7
    %v1089 = vsub.s32 0, %v1088
    %v1090 = vrot.slane %v1085, %v1089
    %v1096 = vunpack.c.l.b16 %v1081
    %v1097 = vunpack.c.l.b16 %v1082
    %v1098 = vunpack.c.l.b16 %v1083
    %v1099 = vunpack.c.l.b16 %v1084
    %v1100 = vpack.c.b16 %v1097, %v1096
    %v1101 = vpack.c.b16 %v1099, %v1098
    %v1105 = vsel %vm93, %v1080, 0
    %1107 = vmatprep.subr.bf16.mxu0 0
    %1108 = vmatpush1.bf16.msra.mxu0 %v1100
    %1109 = vmatprep.subr.bf16.mxu0 0
    %1110 = vmatpush1.bf16.msra.mxu0 %v1101
    %1111 = vmatprep.subr.bf16.mxu0 0
    %1112 = vmatpush1.bf16.msra.mxu0 0
    %1113 = vmatprep.subr.bf16.mxu0 0
    %1114 = vmatpush1.bf16.msra.mxu0 0
    %1115 = vmatprep.subr.bf16.mxu0 0
    %1116 = vmatpush1.bf16.msra.mxu0 0
    %1117 = vmatprep.subr.bf16.mxu0 0
    %1118 = vmatpush1.bf16.msra.mxu0 0
    %1119 = vmatprep.subr.bf16.mxu0 0
    %1120 = vmatpush1.bf16.msra.mxu0 0
    %1121 = vmatprep.subr.bf16.mxu0 0
    %1122 = vmatpush1.bf16.msra.mxu0 0
    %1123 = vmatprep.subr.bf16.mxu0 0
    %1124 = vmatpush1.bf16.msra.mxu0 0
    %1125 = vmatprep.subr.bf16.mxu0 0
    %1126 = vmatpush1.bf16.msra.mxu0 0
    %1127 = vmatprep.subr.bf16.mxu0 0
    %1128 = vmatpush1.bf16.msra.mxu0 0
    %1129 = vmatprep.subr.bf16.mxu0 0
    %1130 = vmatpush1.bf16.msra.mxu0 0
    %1131 = vmatprep.subr.bf16.mxu0 0
    %1132 = vmatpush1.bf16.msra.mxu0 0
    %1133 = vmatprep.subr.bf16.mxu0 0
    %1134 = vmatpush1.bf16.msra.mxu0 0
    %1135 = vmatprep.subr.bf16.mxu0 0
    %1136 = vmatpush1.bf16.msra.mxu0 0
    %1137 = vmatprep.subr.bf16.mxu0 0
    %1138 = vmatpush1.bf16.msra.mxu0 0
    %1139 = vmatprep.mubr.bf16.mxu0 0
    %1140 = vmatmul.mubr.bf16.gmra.mrb[0].mxu0 %v1105
    %v1141 = vpop.f32.mrb[0].mxu0
    %v1142 = vadd.f32 %v1090, %v1141
    %v1143 = vpop.f32.mrb[0].mxu0
    %v1144 = vpop.f32.mrb[0].mxu0
    %v1145 = vadd.f32 %v1090, %v1144
    %v1146 = vpop.f32.mrb[0].mxu0
    %1147 = vdwg.mxu0
    %1148 = vst.msk [vmem:[#allocation8] sm:$0xff] %vm93, %v1142
    %1149 = vst.msk [vmem:[#allocation8 + $0x8] sm:$0xff] %vm93, %v1145
    // Predicated region
    $region34: #{tpu_custom_call.1} parent=1 // pred_check
      _
    $region35: #{tpu_custom_call.1} parent=1 // pred_check_branch
      %1151 = sbr.rel (0) target = $region37
    $region36: #{tpu_custom_call.1} parent=1 // pred_region
      %s1153 = ssub.s32 256, 256
      %1154 = vsyncadd [#allocation4], %s1153
      %s1155 = sshll.u32 [#allocation8], 4
      %s1156 = int_to_ptr.vmem [resolvable:$true] %s1155
      %1161 = dma.vmem_to_hbm [thread:$0]  %s1156, 256, %s5, [#allocation4], 128, 128, 8
    $region37: #{tpu_custom_call.1} parent=1 // pred_fallthru
      _
    // Predicated region
    $region38: #{tpu_custom_call.1} parent=1 // pred_check
      _
    $region39: #{tpu_custom_call.1} parent=1 // pred_check_branch
      %1163 = sbr.rel (0) target = $region41
    $region40: #{tpu_custom_call.1} parent=1 // pred_region
      %1164 = dma.done [#allocation4], 256
    $region41: #{tpu_custom_call.1} parent=1 // pred_fallthru
      _
    %1165 = vsyncpa [#allocation3], 1
    %1166 = vsyncpa [#allocation6], 1
    %1167 = vsyncpa [#allocation4], 1

</llo_original>
